<compile_context>
chip_gen: v5e
topology: v5e:2x2
jax: 0.10.0
libtpu: 0.0.40
codegen_flags: <defaults>
</compile_context>

<pallas_src>
import functools

import jax
import jax.numpy as jnp
from jax import lax
from jax.experimental import pallas as pl
from jax.experimental.pallas import tpu as pltpu


_LANE = 128
# Raise the scoped-VMEM budget (defaults: 16 MiB v5e / 32 MiB v6e / 32 MiB v7x).
# 48 MiB stays inside v7x's 64 MiB physical VMEM and well inside v5e/v6e's 128.
_VMEM_LIMIT_BYTES = 48 * 1024 * 1024
# ~8 MiB per pipelined X block; lane count capped at 16384, always 128-aligned.
_X_BLOCK_BYTES = 8 * 1024 * 1024
_MAX_LANES = 16384


def _cdiv(a, b):
    return -(-a // b)


def _choose_hw_tile(ch, hw, itemsize):
    lanes = _X_BLOCK_BYTES // max(1, ch * itemsize)
    lanes = max(_LANE, min(_MAX_LANES, (lanes // _LANE) * _LANE))
    if lanes >= hw:
        return hw          # single full-extent block: no tail, no (8,128) issue
    return lanes           # multiple of 128; ragged tail is masked in-kernel


def _resolve_tile(ch, hw, itemsize, hw_tile):
    if hw_tile is not None:
        # user-supplied tile must be a multiple of 128 when < hw
        return min(hw_tile, hw)
    return _choose_hw_tile(ch, hw, itemsize)


def _compiler_params(dim_sem):
    return pltpu.CompilerParams(dimension_semantics=dim_sem,
                                vmem_limit_bytes=_VMEM_LIMIT_BYTES)


def _prep_x(x_bchw, compute_dtype):
    b, ch, h, w = x_bchw.shape
    x = x_bchw.reshape(b, ch, h * w)          # free reshape, no jnp.pad
    if compute_dtype is not None and x.dtype != compute_dtype:
        x = x.astype(compute_dtype)           # opt-in bf16 streaming (HBM-bound layers)
    return x, h * w


# ----------------------------------------------------------------------------
# Kernel 1: per-batch, per-split partial random-projected Gram
#   G_part[b, s] = P[b] (sum_{k in split s} X_k X_k^T) P[b]^T / (h*w*n_proj)
# grid = (b, n_split, kps); S accumulated in a (ch, ch) f32 scratch.
# A scalar-prefetched block table clamps logical (s, k) chunks to real blocks;
# redundant / tail lanes are masked to zero so they contribute nothing.
# ----------------------------------------------------------------------------
def _gram_partial_kernel(blk_tbl_ref, proj_ref, x_ref, g_ref, s_ref, *,
                         hw, t_hw, kps, inv_scale, needs_mask):
    del blk_tbl_ref                     # consumed only by the index_maps
    s_idx = pl.program_id(1)
    k = pl.program_id(2)

    @pl.when(k == 0)
    def _():
        s_ref[...] = jnp.zeros_like(s_ref)

    x = x_ref[0]                        # (ch, t_hw), native dtype
    if needs_mask:
        # Unclamped global chunk index; lanes beyond hw are undefined on TPU
        # reads and MUST be zeroed before the contraction.
        g_idx = s_idx * kps + k
        valid = hw - g_idx * t_hw
        lane = lax.broadcasted_iota(jnp.int32, x.shape, 1)
        x = jnp.where(lane < valid, x, jnp.zeros_like(x))

    # S += X_k @ X_k^T (contract the lane/hw axis of both operands; MXU-native
    # transposed-RHS matmul, no explicit vxpose of the (ch, t_hw) tile).
    s_ref[...] += lax.dot_general(
        x, x, dimension_numbers=(((1,), (1,)), ((), ())),
        preferred_element_type=jnp.float32)

    @pl.when(k == kps - 1)
    def _():
        proj = proj_ref[0].astype(jnp.float32)          # (n_proj, ch)
        ps = jnp.dot(proj, s_ref[...], preferred_element_type=jnp.float32)
        gm = lax.dot_general(                           # ps @ proj^T
            ps, proj, dimension_numbers=(((1,), (1,)), ((), ())),
            preferred_element_type=jnp.float32)
        g_ref[0, 0] = (gm * inv_scale).astype(g_ref.dtype)


def gram_matrix_pallas(x_bchw, proj, *, core_split=None, compute_dtype=None,
                       hw_tile=None):
    b, ch, h, w = x_bchw.shape
    n_proj = proj.shape[1]
    x, hw = _prep_x(x_bchw, compute_dtype)
    t_hw = _resolve_tile(ch, hw, x.dtype.itemsize, hw_tile)
    num_k = _cdiv(hw, t_hw)

    # hw-reduction split across TensorCores (benefits v7x's 2 TCs when b is
    # small; harmless elsewhere). Splitting a single chunk is pointless.
    n_split = core_split if core_split is not None else (2 if b == 1 else 1)
    n_split = max(1, min(n_split, num_k))
    kps = _cdiv(num_k, n_split)
    needs_mask = (t_hw * num_k != hw) or (n_split * kps != num_k)

    # Block-index table (scalar-prefetched to SMEM): every DMA starts at a real
    # in-bounds block; redundant logical chunks re-read the last block and are
    # fully masked out in-kernel.
    blk_tbl = jnp.minimum(
        jnp.arange(n_split * kps, dtype=jnp.int32), num_k - 1
    ).reshape(n_split, kps)

    kernel = functools.partial(
        _gram_partial_kernel, hw=hw, t_hw=t_hw, kps=kps,
        inv_scale=1.0 / (hw * n_proj), needs_mask=needs_mask)

    g_parts = pl.pallas_call(
        kernel,
        out_shape=jax.ShapeDtypeStruct((b, n_split, n_proj, n_proj), jnp.float32),
        grid_spec=pltpu.PrefetchScalarGridSpec(
            num_scalar_prefetch=1,
            grid=(b, n_split, kps),
            in_specs=[
                # proj / output maps are independent of k -> stay resident
                pl.BlockSpec((1, n_proj, ch), lambda i, s, k, tbl: (i, 0, 0)),
                pl.BlockSpec((1, ch, t_hw), lambda i, s, k, tbl: (i, 0, tbl[s, k])),
            ],
            out_specs=pl.BlockSpec((1, 1, n_proj, n_proj),
                                   lambda i, s, k, tbl: (i, s, 0, 0)),
            scratch_shapes=[pltpu.VMEM((ch, ch), jnp.float32)],
        ),
        compiler_params=_compiler_params(("parallel", "parallel", "arbitrary")),
    )(blk_tbl, proj, x)
    # partial Grams are additive (S is); tiny reduce in JAX
    return jnp.sum(g_parts, axis=1)


# ----------------------------------------------------------------------------
# Kernel 2: fused Gram + MSE vs. the fixed target Gram (no core split).
# Emits per-batch partial SSE into a lane-dense (b, 1, 128) slab so the batch
# axis stays "parallel"; the final mean is computed in JAX.
# ----------------------------------------------------------------------------
def _gram_mse_kernel(proj_ref, x_ref, tgt_ref, out_ref, s_ref, *,
                     hw, t_hw, inv_scale, needs_mask):
    k = pl.program_id(1)

    @pl.when(k == 0)
    def _():
        s_ref[...] = jnp.zeros_like(s_ref)

    x = x_ref[0]                        # (ch, t_hw)
    if needs_mask:
        valid = hw - k * t_hw
        lane = lax.broadcasted_iota(jnp.int32, x.shape, 1)
        x = jnp.where(lane < valid, x, jnp.zeros_like(x))
    s_ref[...] += lax.dot_general(
        x, x, dimension_numbers=(((1,), (1,)), ((), ())),
        preferred_element_type=jnp.float32)

    @pl.when(k == pl.num_programs(1) - 1)
    def _():
        proj = proj_ref[0].astype(jnp.float32)
        ps = jnp.dot(proj, s_ref[...], preferred_element_type=jnp.float32)
        g = lax.dot_general(
            ps, proj, dimension_numbers=(((1,), (1,)), ((), ())),
            preferred_element_type=jnp.float32) * inv_scale
        diff = g - tgt_ref[0].astype(jnp.float32)
        sq = jnp.sum(diff * diff)                    # per-batch SSE
        # lane-dense broadcast store; the JAX side reads [:, 0, 0]
        out_ref[...] = jnp.full(out_ref.shape, sq, dtype=out_ref.dtype)


def gram_mse_loss_pallas(x_bchw, proj, target, *, core_split=None,
                         compute_dtype=None, hw_tile=None):
    b, ch, h, w = x_bchw.shape
    n_proj = proj.shape[1]
    n_split = core_split if core_split is not None else (2 if b == 1 else 1)
    if n_split > 1:
        # Small-batch v7x path: split the hw reduction across TensorCores in
        # the Gram kernel and finish the tiny MSE in JAX.
        g = gram_matrix_pallas(x_bchw, proj, core_split=n_split,
                               compute_dtype=compute_dtype, hw_tile=hw_tile)
        return jnp.mean((g - target.astype(jnp.float32)) ** 2)

    x, hw = _prep_x(x_bchw, compute_dtype)
    t_hw = _resolve_tile(ch, hw, x.dtype.itemsize, hw_tile)
    num_k = _cdiv(hw, t_hw)
    needs_mask = (t_hw * num_k != hw)
    kernel = functools.partial(_gram_mse_kernel, hw=hw, t_hw=t_hw,
                               inv_scale=1.0 / (hw * n_proj),
                               needs_mask=needs_mask)
    partial_sums = pl.pallas_call(
        kernel,
        out_shape=jax.ShapeDtypeStruct((b, 1, 128), jnp.float32),
        grid_spec=pltpu.PrefetchScalarGridSpec(
            num_scalar_prefetch=0,
            grid=(b, num_k),
            in_specs=[
                pl.BlockSpec((1, n_proj, ch), lambda i, k: (i, 0, 0)),
                pl.BlockSpec((1, ch, t_hw), lambda i, k: (i, 0, k)),
                pl.BlockSpec((1, n_proj, n_proj), lambda i, k: (i, 0, 0)),
            ],
            out_specs=pl.BlockSpec((1, 1, 128), lambda i, k: (i, 0, 0)),
            scratch_shapes=[pltpu.VMEM((ch, ch), jnp.float32)],
        ),
        compiler_params=_compiler_params(("parallel", "arbitrary")),
    )(proj, x, target)
    return jnp.sum(partial_sums[:, 0, 0]) / (b * n_proj * n_proj)


# ----------------------------------------------------------------------------
# Module-equivalent wrapper (forward-pass semantics of the PyTorch module)
# ----------------------------------------------------------------------------
class GramMatrixLossRandomProjection:
    def __init__(self, target_feature, n_proj, *, key, core_split=None,
                 compute_dtype=None):
        b, ch, h, w = target_feature.shape
        self.n_proj = max(1, int(n_proj * ch))
        proj = jax.random.normal(key, (b, self.n_proj, ch), dtype=jnp.float32)
        # torch.norm(proj, dim=1, keepdim=True): L2 norm over the n_proj axis.
        proj = proj / jnp.linalg.norm(proj, axis=1, keepdims=True)
        self.proj = proj
        self.core_split = core_split
        self.compute_dtype = compute_dtype
        self.target = gram_matrix_pallas(target_feature, proj,
                                         core_split=core_split,
                                         compute_dtype=compute_dtype)

    def __call__(self, x):
        # TODO(synk): wrap in jax.custom_vjp before use under jax.grad
        # (pallas_call has no autodiff rule; bwd = c * P^T (G - T) P X).
        return gram_mse_loss_pallas(x, self.proj, self.target,
                                    core_split=self.core_split,
                                    compute_dtype=self.compute_dtype)


# ----------------------------------------------------------------------------
# Pure-JAX references for correctness checks
# ----------------------------------------------------------------------------
def _ref_gram(x_bchw, proj):
    b, ch, h, w = x_bchw.shape
    n_proj = proj.shape[1]
    x = x_bchw.reshape(b, ch, h * w).astype(jnp.float32)
    y = jnp.einsum("bpc,bcn->bpn", proj, x)
    return jnp.einsum("bpn,bqn->bpq", y, y) / (h * w * n_proj)


def _ref_loss(x_bchw, proj, target):
    return jnp.mean((_ref_gram(x_bchw, proj) - target) ** 2)


if __name__ == "__main__":
    key = jax.random.PRNGKey(0)
    k_tgt, k_in, k_proj, k_a, k_b = jax.random.split(key, 5)

    # --- primary module-equivalent check (b=2, ch=4, 16x16) ------------------
    b, ch, h, w = 2, 4, 16, 16
    target_feature = jax.random.normal(k_tgt, (b, ch, h, w), dtype=jnp.float32)
    x = jax.random.normal(k_in, (b, ch, h, w), dtype=jnp.float32)

    loss_mod = GramMatrixLossRandomProjection(target_feature, 2.0, key=k_proj)
    loss = jax.block_until_ready(loss_mod(x))

    g_ref = _ref_gram(target_feature, loss_mod.proj)
    assert jnp.allclose(loss_mod.target, g_ref, rtol=1e-4, atol=1e-5), "gram mismatch"
    ref = _ref_loss(x, loss_mod.proj, loss_mod.target)
    assert jnp.allclose(loss, ref, rtol=1e-4, atol=1e-6), (loss, ref)

    # --- unaligned hw (143 lanes, single full-extent block, no pad) ----------
    b2, ch2, h2, w2 = 1, 8, 11, 13
    x2 = jax.random.normal(k_a, (b2, ch2, h2, w2), dtype=jnp.float32)
    p2 = jax.random.normal(k_b, (b2, 2 * ch2, ch2), dtype=jnp.float32)
    p2 = p2 / jnp.linalg.norm(p2, axis=1, keepdims=True)
    g2 = jax.block_until_ready(gram_matrix_pallas(x2, p2))
    assert jnp.allclose(g2, _ref_gram(x2, p2), rtol=1e-4, atol=1e-5), "unaligned gram"

    # --- multi-chunk tail masking + core split + fused loss ------------------
    b3, ch3, h3, w3 = 2, 8, 12, 30            # hw=360: chunks of 128, ragged tail
    x3 = jax.random.normal(k_a, (b3, ch3, h3, w3), dtype=jnp.float32)
    p3 = jax.random.normal(k_b, (b3, 2 * ch3, ch3), dtype=jnp.float32)
    p3 = p3 / jnp.linalg.norm(p3, axis=1, keepdims=True)
    g3_ref = _ref_gram(x3, p3)
    g3a = jax.block_until_ready(gram_matrix_pallas(x3, p3, hw_tile=128))
    g3b = jax.block_until_ready(gram_matrix_pallas(x3, p3, hw_tile=128, core_split=2))
    assert jnp.allclose(g3a, g3_ref, rtol=1e-4, atol=1e-5), "tail-masked gram"
    assert jnp.allclose(g3b, g3_ref, rtol=1e-4, atol=1e-5), "core-split gram"
    tgt3 = 0.5 * g3_ref
    l3 = jax.block_until_ready(gram_mse_loss_pallas(x3, p3, tgt3, hw_tile=128))
    l3_ref = _ref_loss(x3, p3, tgt3)
    assert jnp.allclose(l3, l3_ref, rtol=1e-4, atol=1e-6), (l3, l3_ref)

    print("KERNEL_OK")
</pallas_src>

<mosaic_0001>
module attributes {stable_mosaic.version = 11 : i64} {
  func.func @_gram_partial_kernel(%arg0: i32, %arg1: i32, %arg2: i32, %arg3: memref<1x1xi32, #tpu.memory_space<smem>>, %arg4: memref<1x8x4xf32, #tpu.memory_space<vmem>>, %arg5: memref<1x4x256xf32, #tpu.memory_space<vmem>>, %arg6: memref<1x1x8x8xf32, #tpu.memory_space<vmem>>, %arg7: memref<4x4xf32, #tpu.memory_space<vmem>>) attributes {dimension_semantics = [#tpu.dimension_semantics<parallel>, #tpu.dimension_semantics<parallel>, #tpu.dimension_semantics<arbitrary>], iteration_bounds = array<i64: 2, 1, 1>, scalar_prefetch = 1 : i64, scratch_operands = 1 : i64, tpu.core_type = #tpu.core_type<tc>, window_params = [{transform_indices = @transform_0, window_bounds = array<i64: 1, 8, 4>}, {transform_indices = @transform_1, window_bounds = array<i64: 1, 4, 256>}, {transform_indices = @transform_2, window_bounds = array<i64: 1, 1, 8, 8>}]} {
    %c0_i32 = arith.constant 0 : i32
    %0 = arith.cmpi eq, %arg2, %c0_i32 : i32
    %1 = arith.extui %0 : i1 to i32
    %c0_i32_0 = arith.constant 0 : i32
    %2 = arith.cmpi ne, %1, %c0_i32_0 : i32
    scf.if %2 {
      %cst_9 = arith.constant 0.000000e+00 : f32
      %12 = vector.broadcast %cst_9 : f32 to vector<4x4xf32>
      %c0_10 = arith.constant 0 : index
      %c0_11 = arith.constant 0 : index
      %13 = vector.load %arg7[%c0_10, %c0_11] : memref<4x4xf32, #tpu.memory_space<vmem>>, vector<4x4xf32>
      tpu.vector_store %arg7[%c0_10, %c0_11], %12 {strides = array<i32>} : memref<4x4xf32, #tpu.memory_space<vmem>>, vector<4x4xf32>,
    } else {
    }
    %c0 = arith.constant 0 : index
    %c0_1 = arith.constant 0 : index
    %c0_2 = arith.constant 0 : index
    %3 = vector.load %arg5[%c0, %c0_1, %c0_2] : memref<1x4x256xf32, #tpu.memory_space<vmem>>, vector<1x4x256xf32>
    %4 = vector.shape_cast %3 : vector<1x4x256xf32> to vector<4x256xf32>
    %c0_3 = arith.constant 0 : index
    %c0_4 = arith.constant 0 : index
    %5 = vector.load %arg7[%c0_3, %c0_4] : memref<4x4xf32, #tpu.memory_space<vmem>>, vector<4x4xf32>
    %cst = arith.constant dense<0.000000e+00> : vector<4x4xf32>
    %6 = tpu.matmul %4, %4, %cst {dimension_numbers = #tpu.dot_dimension_numbers<[1], [1], [0], [0], [0, 0, 1, 0], [], []>} : vector<4x256xf32>, vector<4x256xf32>, vector<4x4xf32> -> vector<4x4xf32>
    %7 = arith.addf %5, %6 : vector<4x4xf32>
    %c0_5 = arith.constant 0 : index
    %c0_6 = arith.constant 0 : index
    %8 = vector.load %arg7[%c0_5, %c0_6] : memref<4x4xf32, #tpu.memory_space<vmem>>, vector<4x4xf32>
    tpu.vector_store %arg7[%c0_5, %c0_6], %7 {strides = array<i32>} : memref<4x4xf32, #tpu.memory_space<vmem>>, vector<4x4xf32>,
    %c0_i32_7 = arith.constant 0 : i32
    %9 = arith.cmpi eq, %arg2, %c0_i32_7 : i32
    %10 = arith.extui %9 : i1 to i32
    %c0_i32_8 = arith.constant 0 : i32
    %11 = arith.cmpi ne, %10, %c0_i32_8 : i32
    scf.if %11 {
      %c0_9 = arith.constant 0 : index
      %c0_10 = arith.constant 0 : index
      %c0_11 = arith.constant 0 : index
      %12 = vector.load %arg4[%c0_9, %c0_10, %c0_11] : memref<1x8x4xf32, #tpu.memory_space<vmem>>, vector<1x8x4xf32>
      %13 = vector.shape_cast %12 : vector<1x8x4xf32> to vector<8x4xf32>
      %c0_12 = arith.constant 0 : index
      %c0_13 = arith.constant 0 : index
      %14 = vector.load %arg7[%c0_12, %c0_13] : memref<4x4xf32, #tpu.memory_space<vmem>>, vector<4x4xf32>
      %cst_14 = arith.constant dense<0.000000e+00> : vector<8x4xf32>
      %15 = tpu.matmul %13, %14, %cst_14 {dimension_numbers = #tpu.dot_dimension_numbers<[1], [0], [0], [1], [0, 0, 1, 1], [], []>} : vector<8x4xf32>, vector<4x4xf32>, vector<8x4xf32> -> vector<8x4xf32>
      %cst_15 = arith.constant dense<0.000000e+00> : vector<8x8xf32>
      %16 = tpu.matmul %15, %13, %cst_15 {dimension_numbers = #tpu.dot_dimension_numbers<[1], [1], [0], [0], [0, 0, 1, 0], [], []>} : vector<8x4xf32>, vector<8x4xf32>, vector<8x8xf32> -> vector<8x8xf32>
      %cst_16 = arith.constant 4.8828125E-4 : f32
      %17 = vector.broadcast %cst_16 : f32 to vector<8x8xf32>
      %18 = arith.mulf %16, %17 : vector<8x8xf32>
      %c0_17 = arith.constant 0 : index
      %c0_18 = arith.constant 0 : index
      %c0_19 = arith.constant 0 : index
      %c0_20 = arith.constant 0 : index
      %19 = vector.load %arg6[%c0_17, %c0_18, %c0_19, %c0_20] : memref<1x1x8x8xf32, #tpu.memory_space<vmem>>, vector<1x1x8x8xf32>
      %20 = vector.shape_cast %19 : vector<1x1x8x8xf32> to vector<8x8xf32>
      %21 = vector.shape_cast %18 : vector<8x8xf32> to vector<1x1x8x8xf32>
      tpu.vector_store %arg6[%c0_17, %c0_18, %c0_19, %c0_20], %21 {strides = array<i32>} : memref<1x1x8x8xf32, #tpu.memory_space<vmem>>, vector<1x1x8x8xf32>,
    } else {
    }
    return
  }
  func.func @transform_0(%arg0: i32, %arg1: i32, %arg2: i32, %arg3: memref<1x1xi32, #tpu.memory_space<smem>>) -> (i32, i32, i32) {
    %c0_i32 = arith.constant 0 : i32
    %c0_i32_0 = arith.constant 0 : i32
    %c0_i32_1 = arith.constant 0 : i32
    return %arg0, %c0_i32, %c0_i32_0 : i32, i32, i32
  }
  func.func @transform_1(%arg0: i32, %arg1: i32, %arg2: i32, %arg3: memref<1x1xi32, #tpu.memory_space<smem>>) -> (i32, i32, i32) {
    %0 = arith.index_cast %arg1 : i32 to index
    %1 = arith.index_cast %arg2 : i32 to index
    %2 = memref.load %arg3[%0, %1] : memref<1x1xi32, #tpu.memory_space<smem>>
    %c0_i32 = arith.constant 0 : i32
    %c0_i32_0 = arith.constant 0 : i32
    return %arg0, %c0_i32, %2 : i32, i32, i32
  }
  func.func @transform_2(%arg0: i32, %arg1: i32, %arg2: i32, %arg3: memref<1x1xi32, #tpu.memory_space<smem>>) -> (i32, i32, i32, i32) {
    %c0_i32 = arith.constant 0 : i32
    %c0_i32_0 = arith.constant 0 : i32
    %c0_i32_1 = arith.constant 0 : i32
    return %arg0, %arg1, %c0_i32, %c0_i32_0 : i32, i32, i32, i32
  }
}

</mosaic_0001>

<llo_original>
// kernel: tpu_custom_call.1
$region0: #{tpu_custom_call.1}
  #allocation0 [shape = 'u32[]', space=smem, size = 0x4, offset = 0x4, fixed_abs, tag = 'smem constant byte address 0x4 - core index']
  #allocation1 [shape = 'u32[72,128]{1,0:T(1,128)}', space=vmem, size = 0x9000, scoped, tag = 'internal scratch']
  #allocation2 [shape = 'f32[4,4]{1,0:T(4,128)}', space=vmem, size = 0x800, scoped, tag = 'scratch operand']
  #allocation3 [shape = 's32[1]{0}', space=sflag, size = 0x4, scoped, tag = 'scoped memory for tpu_custom_call.1']
  #allocation4 [shape = 's32[1,1]{1,0:T(1,128)S(6)}', space=smem, size = 0x200, scoped, tag = 'prefetched SMEM operand 0']
  %s0 = inlined_call_operand.<no memory space> [shape: s32[1,1], index: 0, kind: input, shape index: {}]
  %s1 = inlined_call_operand.vmem [shape: f32[2,8,4], index: 1, kind: input, shape index: {}]
  %s2 = inlined_call_operand.vmem [shape: f32[2,4,256], index: 2, kind: input, shape index: {}]
  %s3 = inlined_call_operand.hbm [shape: f32[2,1,8,8], index: 3, kind: output, shape index: {}]
  %s4 = sld [smem:[#allocation0]]
  $region49: #{tpu_custom_call.1} parent=0
    _
  %s6 = ssub.s32 1, %s4
  %s7 = scalar_select 0, %s6, %s4
  %8 = sst [smem:[#allocation4]] %s0
  $region1: #{tpu_custom_call.1} parent=0
    #allocation5 [shape = 'u8[8192]{0}', space=vmem, size = 0x2000, scoped, tag = 'output window, operand 0']
    #allocation6 [shape = 's32[2]{0}', space=sflag, size = 0x8, scoped, tag = 'scoped memory for tpu_custom_call.1']
    %9 = vsyncpa [#allocation6], 0
    %s10 = scalar_lea.sflag [#allocation6], 1
    %11 = vsyncpa %s10, 0
    loop: start=0, step=1, limit=4
    $region2: #{tpu_custom_call.1} parent=1 // loop_pre_header
      _
    $region3: #{tpu_custom_call.1} parent=1 // loop_header
      %s13 = sphi 0, %s17
      %p14 = scmp.ge.s32.totalorder %s13, 4
      %s20 = sphi 0, %s39
      %s21 = sphi 0, %s35
      %s22 = sphi 0, %s31
      %s23 = sphi 0, %s20
      %s24 = sphi 0, %s21
      %s25 = sphi 0, %s22
      %s26 = sphi 0, %s23
      %s27 = sphi 0, %s24
      %s28 = sphi 0, %s25
      %s42 = sphi 0, %s44
      %s45 = sphi 0, %s42
      %s46 = sphi 0, %s45
      %s62 = sphi 0, %s46
      %s86 = sphi 0, %s88
      %s89 = sphi 0, %s86
      %s90 = sphi 0, %s89
      %s106 = sphi 0, %s90
      %s114 = sphi 0, %s116
      %s117 = sphi 0, %s114
      %s118 = sphi 0, %s117
      %s134 = sphi 0, %s118
    $region4: #{tpu_custom_call.1} parent=1 // loop_header_branch
      %16 = sbr.rel (%p14) target = $region8
    $region5: #{tpu_custom_call.1} parent=1 // loop_body
      %s18 = ssub.s32 %s13, 1
      %s19 = ssub.s32 %s13, 2
      %s29 = sadd.s32 1, %s22
      %p30 = scmp.ge.s32.totalorder %s29, 1
      %s31 = scalar_select %p30, 0, %s29
      %s32 = sadd.s32 1, %s21
      %s33 = scalar_select %p30, %s32, %s21
      %p34 = scmp.ge.s32.totalorder %s33, 1
      %s35 = scalar_select %p34, 0, %s33
      %s36 = sadd.s32 1, %s20
      %s37 = scalar_select %p34, %s36, %s20
      %p38 = scmp.ge.s32.totalorder %s37, 2
      %s39 = scalar_select %p38, 0, %s37
      %s40 = ssub.s32 %s20, %s39
      %p41 = scmp.eq.s32.totalorder %s40, 0
      %s43 = sadd.s32 %s42, 1
      %s44 = scalar_select %p41, %s42, %s43
      %p47 = pneg %p41
      %p48 = scmp.eq.s32.totalorder %s13, 1
      %p49 = por %p47, %p48
      %p50 = scmp.ne.s32.totalorder %s42, %s45
      %p51 = scmp.eq.s32.totalorder %s13, 0
      %p52 = por %p50, %p51
      %p53 = scmp.ne.s32.totalorder %s42, %s45
      %p54 = scmp.eq.s32.totalorder %s18, 1
      %p55 = por %p53, %p54
      %p56 = scmp.ne.s32.totalorder %s45, %s46
      %p57 = scmp.eq.s32.totalorder %s18, 0
      %p58 = por %p56, %p57
      %p59 = scmp.ne.s32.totalorder %s45, %s46
      %p60 = scmp.eq.s32.totalorder %s19, 1
      %p61 = por %p59, %p60
      %p63 = scmp.ne.s32.totalorder %s46, %s62
      %p64 = scmp.eq.s32.totalorder %s19, 0
      %p65 = por %p63, %p64
      %s66 = sshra.s32 %s22, 7
      %s67 = sand.u32 %s22, 127
      %s68 = sadd.s32 %s66, %s21
      %s69 = smul.u32 %s68, 128
      %s70 = sshra.s32 %s22, 7
      %s71 = sand.u32 %s22, 127
      %s72 = sadd.s32 %s69, %s71
      %s73 = sld [smem:[#allocation4 + %s72]]
      %s74 = sshra.s32 %s31, 7
      %s75 = sand.u32 %s31, 127
      %s76 = sadd.s32 %s74, %s35
      %s77 = smul.u32 %s76, 128
      %s78 = sshra.s32 %s31, 7
      %s79 = sand.u32 %s31, 127
      %s80 = sadd.s32 %s77, %s79
      %s81 = sld [smem:[#allocation4 + %s80]]
      %s82 = ssub.s32 %s20, %s39
      %s83 = ssub.s32 %s73, %s81
      %s84 = sor.u32 %s82, %s83
      %p85 = scmp.eq.s32.totalorder %s84, 0
      %s87 = sadd.s32 %s86, 1
      %s88 = scalar_select %p85, %s86, %s87
      %p91 = pneg %p85
      %p92 = scmp.eq.s32.totalorder %s13, 1
      %p93 = por %p91, %p92
      %p94 = scmp.ne.s32.totalorder %s86, %s89
      %p95 = scmp.eq.s32.totalorder %s13, 0
      %p96 = por %p94, %p95
      %p97 = scmp.ne.s32.totalorder %s86, %s89
      %p98 = scmp.eq.s32.totalorder %s18, 1
      %p99 = por %p97, %p98
      %p100 = scmp.ne.s32.totalorder %s89, %s90
      %p101 = scmp.eq.s32.totalorder %s18, 0
      %p102 = por %p100, %p101
      %p103 = scmp.ne.s32.totalorder %s89, %s90
      %p104 = scmp.eq.s32.totalorder %s19, 1
      %p105 = por %p103, %p104
      %p107 = scmp.ne.s32.totalorder %s90, %s106
      %p108 = scmp.eq.s32.totalorder %s19, 0
      %p109 = por %p107, %p108
      %s110 = ssub.s32 %s20, %s39
      %s111 = ssub.s32 %s21, %s35
      %s112 = sor.u32 %s110, %s111
      %p113 = scmp.eq.s32.totalorder %s112, 0
      %s115 = sadd.s32 %s114, 1
      %s116 = scalar_select %p113, %s114, %s115
      %p119 = pneg %p113
      %p120 = scmp.eq.s32.totalorder %s13, 1
      %p121 = por %p119, %p120
      %p122 = scmp.ne.s32.totalorder %s114, %s117
      %p123 = scmp.eq.s32.totalorder %s13, 0
      %p124 = por %p122, %p123
      %p125 = scmp.ne.s32.totalorder %s114, %s117
      %p126 = scmp.eq.s32.totalorder %s18, 1
      %p127 = por %p125, %p126
      %p128 = scmp.ne.s32.totalorder %s117, %s118
      %p129 = scmp.eq.s32.totalorder %s18, 0
      %p130 = por %p128, %p129
      %p131 = scmp.ne.s32.totalorder %s117, %s118
      %p132 = scmp.eq.s32.totalorder %s19, 1
      %p133 = por %p131, %p132
      %p135 = scmp.ne.s32.totalorder %s118, %s134
      %p136 = scmp.eq.s32.totalorder %s19, 0
      %p137 = por %p135, %p136
      %p138 = scmp.le.s32.totalorder 1, %s13
      %p139 = scmp.lt.s32.totalorder %s13, 3
      %p140 = pnand %p138, %p139
      %p141 = pneg %p140
      // Predicated region
      $region9: #{tpu_custom_call.1} parent=5 // pred_check
        _
      $region10: #{tpu_custom_call.1} parent=5 // pred_check_branch
        %143 = sbr.rel (%p140) target = $region12
      $region11: #{tpu_custom_call.1} parent=5 // pred_region
        %s144 = ssub.s32 %s13, 1
      $region12: #{tpu_custom_call.1} parent=5 // pred_fallthru
        _
      %p145 = scmp.lt.s32.totalorder %s13, 2
      // Predicated region
      $region13: #{tpu_custom_call.1} parent=5 // pred_check
        %p146 = pneg %p145
      $region14: #{tpu_custom_call.1} parent=5 // pred_check_branch
        %148 = sbr.rel (%p146) target = $region16
      $region15: #{tpu_custom_call.1} parent=5 // pred_region
        // Predicated region
        $region17: #{tpu_custom_call.1} parent=15 // pred_check
          %p149 = pneg %p52
        $region18: #{tpu_custom_call.1} parent=15 // pred_check_branch
          %151 = sbr.rel (%p149) target = $region20
        $region19: #{tpu_custom_call.1} parent=15 // pred_region
          %p152 = scmp.lt.s32.totalorder %s20, 1
          %s153 = scalar_select %p152, %s20, 1
          %s154 = smul.addr %s153, 8
          %s155 = scalar_lea.vmem %s1, %s154
        $region20: #{tpu_custom_call.1} parent=15 // pred_fallthru
          _
        // Predicated region
        $region21: #{tpu_custom_call.1} parent=15 // pred_check
          %p156 = pneg %p96
        $region22: #{tpu_custom_call.1} parent=15 // pred_check_branch
          %158 = sbr.rel (%p156) target = $region24
        $region23: #{tpu_custom_call.1} parent=15 // pred_region
          %s159 = sshra.s32 %s22, 7
          %s160 = sand.u32 %s22, 127
          %s161 = sadd.s32 %s159, %s21
          %s162 = smul.u32 %s161, 128
          %s163 = sshra.s32 %s22, 7
          %s164 = sand.u32 %s22, 127
          %s165 = sadd.s32 %s162, %s164
          %s166 = sld [smem:[#allocation4 + %s165]]
          %s167 = smul.u32 2, %s166
          %p168 = scmp.lt.s32.totalorder %s20, 1
          %s169 = scalar_select %p168, %s20, 1
          %p170 = scmp.lt.s32.totalorder %s167, 1
          %s171 = scalar_select %p170, %s167, 1
          %s172 = smul.addr %s169, 2
          %s173 = sadd.s32 %s171, %s172
          %s174 = smul.addr %s173, 4
          %s175 = scalar_lea.vmem %s2, %s174
          %s176 = sshra.s32 %s22, 7
          %s177 = sand.u32 %s22, 127
          %s178 = sadd.s32 %s176, %s21
          %s179 = smul.u32 %s178, 128
          %s180 = sshra.s32 %s22, 7
          %s181 = sand.u32 %s22, 127
          %s182 = sadd.s32 %s179, %s181
          %s183 = sld [smem:[#allocation4 + %s182]]
          %s184 = smul.u32 2, %s183
        $region24: #{tpu_custom_call.1} parent=15 // pred_fallthru
          _
      $region16: #{tpu_custom_call.1} parent=5 // pred_fallthru
        _
      %p185 = scmp.le.s32.totalorder 1, %s13
      %p186 = scmp.lt.s32.totalorder %s13, 3
      %p187 = pnand %p185, %p186
      %p188 = pneg %p187
      // Predicated region
      $region25: #{tpu_custom_call.1} parent=5 // pred_check
        _
      $region26: #{tpu_custom_call.1} parent=5 // pred_check_branch
        %190 = sbr.rel (%p187) target = $region28
      $region27: #{tpu_custom_call.1} parent=5 // pred_region
        %s191 = ssub.s32 %s13, 1
        %p192 = scmp.lt.s32.totalorder %s23, 1
        %s193 = scalar_select %p192, %s23, 1
        %s194 = smul.addr %s193, 8
        %s195 = scalar_lea.vmem %s1, %s194
        %p196 = pneg %p58
        %p197 = pneg %p55
        %s198 = sshra.s32 %s25, 7
        %s199 = sand.u32 %s25, 127
        %s200 = sadd.s32 %s198, %s24
        %s201 = smul.u32 %s200, 128
        %s202 = sshra.s32 %s25, 7
        %s203 = sand.u32 %s25, 127
        %s204 = sadd.s32 %s201, %s203
        %s205 = sld [smem:[#allocation4 + %s204]]
        %s206 = smul.u32 2, %s205
        %p207 = scmp.lt.s32.totalorder %s23, 1
        %s208 = scalar_select %p207, %s23, 1
        %p209 = scmp.lt.s32.totalorder %s206, 1
        %s210 = scalar_select %p209, %s206, 1
        %s211 = smul.addr %s208, 2
        %s212 = sadd.s32 %s210, %s211
        %s213 = smul.addr %s212, 4
        %s214 = scalar_lea.vmem %s2, %s213
        %p215 = pneg %p102
        %p216 = pneg %p99
        %p217 = pneg %p130
        %p218 = pneg %p127
        %s219 = sand.u32 %s117, 1
        %s220 = scalar_lea.sflag [#allocation6], %s219
        %s221 = sand.u32 %s117, 1
        %s222 = smul.addr %s221, 8
        %s223 = scalar_lea.vmem [#allocation5], %s222
        %p224 = scmp.lt.s32.totalorder %s23, 1
        %s225 = scalar_select %p224, %s23, 1
        %s226 = smul.addr %s225, 8
        %s227 = scalar_lea.vmem %s1, %s226
        %s228 = sshra.s32 %s25, 7
        %s229 = sand.u32 %s25, 127
        %s230 = sadd.s32 %s228, %s24
        %s231 = smul.u32 %s230, 128
        %s232 = sshra.s32 %s25, 7
        %s233 = sand.u32 %s25, 127
        %s234 = sadd.s32 %s231, %s233
        %s235 = sld [smem:[#allocation4 + %s234]]
        %s236 = smul.u32 2, %s235
        %p237 = scmp.lt.s32.totalorder %s23, 1
        %s238 = scalar_select %p237, %s23, 1
        %p239 = scmp.lt.s32.totalorder %s236, 1
        %s240 = scalar_select %p239, %s236, 1
        %s241 = smul.addr %s238, 2
        %s242 = sadd.s32 %s240, %s241
        %s243 = smul.addr %s242, 4
        %s244 = scalar_lea.vmem %s2, %s243
        %s245 = sshra.s32 %s25, 7
        %s246 = sand.u32 %s25, 127
        %s247 = sadd.s32 %s245, %s24
        %s248 = smul.u32 %s247, 128
        %s249 = sshra.s32 %s25, 7
        %s250 = sand.u32 %s25, 127
        %s251 = sadd.s32 %s248, %s250
        %s252 = sld [smem:[#allocation4 + %s251]]
        %s253 = smul.u32 2, %s252
        %p254 = scmp.eq.s32.totalorder %s25, 0
        // Predicated region
        $region29: #{tpu_custom_call.1} parent=27 // pred_check
          %p255 = pneg %p254
        $region30: #{tpu_custom_call.1} parent=27 // pred_check_branch
          %257 = sbr.rel (%p255) target = $region32
        $region31: #{tpu_custom_call.1} parent=27 // pred_region
          %vm258 = vcmask 27648
          %259 = vst.msk [vmem:[#allocation2] sm:$0xf] %vm258, 0.0
        $region32: #{tpu_custom_call.1} parent=27 // pred_fallthru
          _
        %v260 = vld [vmem:[%s244] sm:$0xff]
        %v261 = vld [vmem:[#allocation2] sm:$0xf]
        %263 = vst [vmem:[#allocation1] ss:$2 sm:$0xff] %v260
        %v264 = vld.sshfl [vmem:[#allocation1] sm:$0xff pattern:$0x75316420]
        %v265 = vld.sshfl [vmem:[#allocation1 + $0x8] sm:$0xff pattern:$0x75316420]
        %268 = vst [vmem:[#allocation1] ss:$2 sm:$0xff] %v260
        %v269 = vld.sshfl [vmem:[#allocation1] sm:$0xff pattern:$0x75316420]
        %v270 = vld.sshfl [vmem:[#allocation1 + $0x8] sm:$0xff pattern:$0x75316420]
        %273 = vmatpush.xpose.msra.mxu0 0.0
        %274 = vmatpush.xpose.msra.mxu0 0.0
        %275 = vmatpush.xpose.msra.mxu0 0.0
        %276 = vmatpush.xpose.msra.mxu0 0.0
        %277 = vmatpush.xpose.msra.mxu0 0.0
        %278 = vmatpush.xpose.msra.mxu0 0.0
        %279 = vmatpush.xpose.msra.mxu0 0.0
        %280 = vmatpush.xpose.msra.mxu0 0.0
        %281 = vmatpush.xpose.msra.mxu0 0.0
        %282 = vmatpush.xpose.msra.mxu0 0.0
        %283 = vmatpush.xpose.msra.mxu0 0.0
        %284 = vmatpush.xpose.msra.mxu0 0.0
        %285 = vmatpush.xpose.msra.mxu0 0.0
        %286 = vmatpush.xpose.msra.mxu0 0.0
        %287 = vmatpush.xpose.msra.mxu0 0.0
        %288 = vmatpush.xpose.msra.mxu0 %v269
        %289 = vmatmul.f32.gmra.mxu0 %v264
        %v290 = vpop.f32.mrf.mxu0
        %v291 = vadd.f32 0.0, %v290
        %292 = vdwg.mxu0
        %293 = vmatpush.xpose.msra.mxu0 0.0
        %294 = vmatpush.xpose.msra.mxu0 0.0
        %295 = vmatpush.xpose.msra.mxu0 0.0
        %296 = vmatpush.xpose.msra.mxu0 0.0
        %297 = vmatpush.xpose.msra.mxu0 0.0
        %298 = vmatpush.xpose.msra.mxu0 0.0
        %299 = vmatpush.xpose.msra.mxu0 0.0
        %300 = vmatpush.xpose.msra.mxu0 0.0
        %301 = vmatpush.xpose.msra.mxu0 0.0
        %302 = vmatpush.xpose.msra.mxu0 0.0
        %303 = vmatpush.xpose.msra.mxu0 0.0
        %304 = vmatpush.xpose.msra.mxu0 0.0
        %305 = vmatpush.xpose.msra.mxu0 0.0
        %306 = vmatpush.xpose.msra.mxu0 0.0
        %307 = vmatpush.xpose.msra.mxu0 0.0
        %308 = vmatpush.xpose.msra.mxu0 %v270
        %309 = vmatmul.f32.gmra.mxu0 %v265
        %v310 = vpop.f32.mrf.mxu0
        %v311 = vadd.f32 %v291, %v310
        %312 = vdwg.mxu0
        %v313 = vadd.f32 %v261, %v311
        %vm314 = vcmask 27648
        %315 = vst.msk [vmem:[#allocation2] sm:$0xf] %vm314, %v313
        // Predicated region
        $region33: #{tpu_custom_call.1} parent=27 // pred_check
          %p316 = pneg %p254
        $region34: #{tpu_custom_call.1} parent=27 // pred_check_branch
          %318 = sbr.rel (%p316) target = $region36
        $region35: #{tpu_custom_call.1} parent=27 // pred_region
          %v319 = vld [vmem:[%s227] sm:$0xff]
          %v320 = vld [vmem:[#allocation2] sm:$0xf]
          %vm321 = vcmask 31744
          %v323 = vsel %vm321, %v319, 0
          %vm325 = vcmask 1043456
          %v327 = vsel %vm325, %v320, 0
          %329 = vmatpush.msra.mxu0 0.0
          %330 = vmatpush.msra.mxu0 0.0
          %331 = vmatpush.msra.mxu0 0.0
          %332 = vmatpush.msra.mxu0 0.0
          %333 = vmatpush.msra.mxu0 0.0
          %334 = vmatpush.msra.mxu0 0.0
          %335 = vmatpush.msra.mxu0 0.0
          %336 = vmatpush.msra.mxu0 0.0
          %337 = vmatpush.msra.mxu0 0.0
          %338 = vmatpush.msra.mxu0 0.0
          %339 = vmatpush.msra.mxu0 0.0
          %340 = vmatpush.msra.mxu0 0.0
          %341 = vmatpush.msra.mxu0 0.0
          %342 = vmatpush.msra.mxu0 0.0
          %343 = vmatpush.msra.mxu0 0.0
          %344 = vmatpush.msra.mxu0 %v327
          %345 = vmatmul.f32.gmra.mxu0 %v323
          %v346 = vpop.f32.mrf.mxu0
          %v347 = vadd.f32 0.0, %v346
          %348 = vdwg.mxu0
          %v350 = vsel %vm321, %v347, 0
          %352 = vmatpush.xpose.msra.mxu0 0.0
          %353 = vmatpush.xpose.msra.mxu0 0.0
          %354 = vmatpush.xpose.msra.mxu0 0.0
          %355 = vmatpush.xpose.msra.mxu0 0.0
          %356 = vmatpush.xpose.msra.mxu0 0.0
          %357 = vmatpush.xpose.msra.mxu0 0.0
          %358 = vmatpush.xpose.msra.mxu0 0.0
          %359 = vmatpush.xpose.msra.mxu0 0.0
          %360 = vmatpush.xpose.msra.mxu0 0.0
          %361 = vmatpush.xpose.msra.mxu0 0.0
          %362 = vmatpush.xpose.msra.mxu0 0.0
          %363 = vmatpush.xpose.msra.mxu0 0.0
          %364 = vmatpush.xpose.msra.mxu0 0.0
          %365 = vmatpush.xpose.msra.mxu0 0.0
          %366 = vmatpush.xpose.msra.mxu0 0.0
          %367 = vmatpush.xpose.msra.mxu0 %v323
          %368 = vmatmul.f32.gmra.mxu0 %v350
          %v369 = vpop.f32.mrf.mxu0
          %v370 = vadd.f32 0.0, %v369
          %371 = vdwg.mxu0
          %v372 = vmul.f32 %v370, 0.00048828125
          %vm373 = vcmask 64512
          %374 = vst.msk [vmem:[%s223] sm:$0xff] %vm373, %v372
        $region36: #{tpu_custom_call.1} parent=27 // pred_fallthru
          _
        %s375 = sand.u32 %s117, 1
        %s376 = scalar_lea.sflag [#allocation6], %s375
        %s377 = sand.u32 %s117, 1
        %s378 = smul.addr %s377, 8
        %s379 = scalar_lea.vmem [#allocation5], %s378
        // Predicated region
        $region37: #{tpu_custom_call.1} parent=27 // pred_check
          %p380 = pneg %p127
        $region38: #{tpu_custom_call.1} parent=27 // pred_check_branch
          %382 = sbr.rel (%p380) target = $region40
        $region39: #{tpu_custom_call.1} parent=27 // pred_region
          %384 = vsyncadd %s376, 0
          %s385 = sadd.s32 %s24, %s23
          %s386 = smul.addr %s385, 8
          %s387 = scalar_lea.hbm %s3, %s386
          %s389 = sshll.u32 %s379, 4
          %s390 = int_to_ptr.vmem [resolvable:$true] %s389
          %s391 = sshll.u32 %s387, 4
          %s392 = int_to_ptr.hbm [resolvable:$true] %s391
          %394 = dma.vmem_to_hbm [thread:$0]  %s390, 128, %s392, %s376
        $region40: #{tpu_custom_call.1} parent=27 // pred_fallthru
          _
      $region28: #{tpu_custom_call.1} parent=5 // pred_fallthru
        _
      %p395 = scmp.le.s32.totalorder 2, %s13
      // Predicated region
      $region41: #{tpu_custom_call.1} parent=5 // pred_check
        %p396 = pneg %p395
      $region42: #{tpu_custom_call.1} parent=5 // pred_check_branch
        %398 = sbr.rel (%p396) target = $region44
      $region43: #{tpu_custom_call.1} parent=5 // pred_region
        %s399 = ssub.s32 %s13, 2
        // Predicated region
        $region45: #{tpu_custom_call.1} parent=43 // pred_check
          %p400 = pneg %p133
        $region46: #{tpu_custom_call.1} parent=43 // pred_check_branch
          %402 = sbr.rel (%p400) target = $region48
        $region47: #{tpu_custom_call.1} parent=43 // pred_region
          %s403 = sand.u32 %s118, 1
          %s404 = scalar_lea.sflag [#allocation6], %s403
          %s405 = sand.u32 %s118, 1
          %s406 = smul.addr %s405, 8
          %s407 = scalar_lea.vmem [#allocation5], %s406
          %409 = dma.done %s404, 128
        $region48: #{tpu_custom_call.1} parent=43 // pred_fallthru
          _
      $region44: #{tpu_custom_call.1} parent=5 // pred_fallthru
        _
    $region6: #{tpu_custom_call.1} parent=1 // loop_footer
      %s17 = sadd.s32 1, %s13
    $region7: #{tpu_custom_call.1} parent=1 // loop_footer_branch
      %12 = sbr.rel target = $region3
    $region8: #{tpu_custom_call.1} parent=1 // loop_exit
      _
    %410 = vsyncpa [#allocation6], 1
    %s411 = scalar_lea.sflag [#allocation6], 1
    %412 = vsyncpa %s411, 1

</llo_original>
